<compile_context>
chip_gen: v7x
topology: tpu7x:2x2x1
jax: 0.10.0
libtpu: 0.0.40
codegen_flags: <defaults>
</compile_context>

<pallas_src>
import jax
import jax.numpy as jnp
from jax.experimental import pallas as pl
from jax.experimental.pallas import tpu as pltpu

H_PAD = 128    # hidden widths (64, 32) zero-padded to one full lane group
W3_ROWS = 8    # fc3 row vector stored with 8 sublanes (rows 1..7 zero) for MXU alignment


def simplenet_kernel(x_ref, w1_ref, b1_ref, w2_ref, b2_ref, w3_ref, b3_ref, o_ref):
    # x_ref : (TILE_B, IN)    bf16          b1_ref: (1, 128)  f32
    # w1_ref: (IN, 128)       bf16          b2_ref: (1, 128)  f32
    # w2_ref: (128, 128)      bf16          b3_ref: (1,)      f32 (SMEM scalar)
    # w3_ref: (8, 128)        f32 (row 0 = fc3 weight, rows 1..7 zero)
    # o_ref : (1, 1, TILE_B)  f32 (lane-dense output row)
    x = x_ref[...]                                                   # bf16, no upcast

    # fc1 + ReLU  (bf16 MXU, f32 accumulate; bias/ReLU in f32 on the VPU)
    h1 = jnp.dot(x, w1_ref[...], preferred_element_type=jnp.float32)
    h1 = jnp.maximum(h1 + b1_ref[...], 0.0)                          # (TILE_B, 128) f32

    # fc2 + ReLU
    h2 = jnp.dot(h1.astype(jnp.bfloat16), w2_ref[...],
                 preferred_element_type=jnp.float32)
    h2 = jnp.maximum(h2 + b2_ref[...], 0.0)                          # (TILE_B, 128) f32

    # fc3 computed "transposed": contract the fc3 row with h2's feature axis so the
    # result lands lane-dense along the batch axis (avoids a 1-column MXU matmul and
    # masked vst.msk stores on a last-dim-1 output).
    y = jax.lax.dot_general(
        w3_ref[...], h2,
        dimension_numbers=(((1,), (1,)), ((), ())),
        preferred_element_type=jnp.float32)                          # (8, TILE_B); rows 1..7 zero
    y = y[0:1, :] + b3_ref[0]                                        # (1, TILE_B)
    o_ref[...] = y[None].astype(o_ref.dtype)                         # (1, 1, TILE_B)


def _round_up(n, m):
    return (n + m - 1) // m * m


def simplenet_forward(x, packed_params, tile_b=512):
    """Fused SimpleNet forward. x: (B, input_size) -> (B, 1) float32."""
    w1p, b1p, w2p, b2p, w3p, b3p = packed_params
    B, in_dim = x.shape
    assert w1p.shape[0] == in_dim

    # Batch tile: >=512 rows amortizes the ~0.35us/step pipeline overhead; a multiple of
    # 128 keeps the lane-dense output block aligned.  Small batches collapse to one tile.
    tile = min(tile_b, _round_up(B, 128))
    b_pad = _round_up(B, tile)
    num_tiles = b_pad // tile

    xb = x.astype(jnp.bfloat16)
    if b_pad != B:
        xb = jnp.pad(xb, ((0, b_pad - B), (0, 0)))

    def resident(arr):  # whole array, same block every grid step -> stays in VMEM
        return pl.BlockSpec(arr.shape, lambda i: (0,) * arr.ndim)

    flops = 2 * b_pad * (in_dim * H_PAD + H_PAD * H_PAD + H_PAD)
    bytes_accessed = (xb.size * 2 + w1p.size * 2 + w2p.size * 2
                      + (b1p.size + b2p.size + w3p.size + b3p.size) * 4
                      + b_pad * 4)

    out = pl.pallas_call(
        simplenet_kernel,
        out_shape=jax.ShapeDtypeStruct((num_tiles, 1, tile), jnp.float32),
        grid=(num_tiles,),
        in_specs=[
            pl.BlockSpec((tile, in_dim), lambda i: (i, 0)),        # x: batch-tiled
            resident(w1p), resident(b1p),
            resident(w2p), resident(b2p),
            resident(w3p),
            pl.BlockSpec(memory_space=pltpu.MemorySpace.SMEM),     # scalar fc3 bias
        ],
        out_specs=pl.BlockSpec((1, 1, tile), lambda i: (i, 0, 0)),  # lane-dense rows
        compiler_params=pltpu.CompilerParams(
            dimension_semantics=("parallel",),  # v7x: shard batch tiles across both TCs
        ),
        cost_estimate=pl.CostEstimate(
            flops=flops, transcendentals=0, bytes_accessed=bytes_accessed),
    )(xb, w1p, b1p, w2p, b2p, w3p, b3p)

    # (num_tiles, 1, tile) lane-dense rows -> (B, 1) column
    return out.reshape(b_pad, 1)[:B]


def init_params(key, input_size):
    """Deterministic init mimicking nn.Linear's U(-1/sqrt(fan_in), 1/sqrt(fan_in)).
    Weights stored [in, out] so the math is x @ W (== PyTorch's x @ W.T)."""
    def linear_init(k, fan_in, fan_out):
        kw, kb = jax.random.split(k)
        bound = 1.0 / jnp.sqrt(fan_in)
        w = jax.random.uniform(kw, (fan_in, fan_out), jnp.float32, -bound, bound)
        b = jax.random.uniform(kb, (fan_out,), jnp.float32, -bound, bound)
        return w, b

    k1, k2, k3 = jax.random.split(key, 3)
    w1, b1 = linear_init(k1, input_size, 64)
    w2, b2 = linear_init(k2, 64, 32)
    w3, b3 = linear_init(k3, 32, 1)
    return w1, b1, w2, b2, w3, b3


def prepare_params(params):
    """One-time offline repack: pad hidden dims to 128 lanes, cast matmul weights to bf16."""
    w1, b1, w2, b2, w3, b3 = params
    in_dim = w1.shape[0]

    def pad2(a, rows, cols):
        return jnp.zeros((rows, cols), a.dtype).at[: a.shape[0], : a.shape[1]].set(a)

    w1p = pad2(w1, in_dim, H_PAD).astype(jnp.bfloat16)       # (IN, 128)
    b1p = pad2(b1[None, :], 1, H_PAD).astype(jnp.float32)    # (1, 128)
    w2p = pad2(w2, H_PAD, H_PAD).astype(jnp.bfloat16)        # (128, 128)
    b2p = pad2(b2[None, :], 1, H_PAD).astype(jnp.float32)    # (1, 128)
    w3p = pad2(w3.T, W3_ROWS, H_PAD).astype(jnp.float32)     # (8, 128), only row 0 valid
    b3p = jnp.reshape(b3, (1,)).astype(jnp.float32)          # (1,) -> SMEM scalar
    return w1p, b1p, w2p, b2p, w3p, b3p


def simplenet_reference(x, params):
    w1, b1, w2, b2, w3, b3 = params
    h1 = jnp.maximum(x @ w1 + b1, 0.0)
    h2 = jnp.maximum(h1 @ w2 + b2, 0.0)
    return h2 @ w3 + b3


if __name__ == "__main__":
    key = jax.random.PRNGKey(0)
    k_x, k_p, k_x2 = jax.random.split(key, 3)

    input_size = 32
    params = init_params(k_p, input_size)
    packed = prepare_params(params)

    # Small, module-scale case: single tile, padded batch.
    x_small = jax.random.normal(k_x, (8, input_size), jnp.float32)
    out_small = simplenet_forward(x_small, packed)
    jax.block_until_ready(out_small)
    ref_small = simplenet_reference(x_small, params)
    assert out_small.shape == (8, 1)
    assert jnp.allclose(out_small, ref_small, atol=5e-2, rtol=5e-2), float(
        jnp.max(jnp.abs(out_small - ref_small)))

    # Larger case: exercises the multi-tile grid (+ batch padding) path.
    x_big = jax.random.normal(k_x2, (1000, input_size), jnp.float32)
    out_big = simplenet_forward(x_big, packed)
    jax.block_until_ready(out_big)
    ref_big = simplenet_reference(x_big, params)
    assert out_big.shape == (1000, 1)
    assert jnp.allclose(out_big, ref_big, atol=5e-2, rtol=5e-2), float(
        jnp.max(jnp.abs(out_big - ref_big)))

    print("KERNEL_OK")
</pallas_src>

<mosaic_0001>
module attributes {stable_mosaic.version = 11 : i64} {
  func.func @simplenet_kernel(%arg0: i32, %arg1: memref<128x32xbf16, #tpu.memory_space<vmem>>, %arg2: memref<32x128xbf16, #tpu.memory_space<vmem>>, %arg3: memref<1x128xf32, #tpu.memory_space<vmem>>, %arg4: memref<128x128xbf16, #tpu.memory_space<vmem>>, %arg5: memref<1x128xf32, #tpu.memory_space<vmem>>, %arg6: memref<8x128xf32, #tpu.memory_space<vmem>>, %arg7: memref<1xf32, #tpu.memory_space<smem>>, %arg8: memref<1x1x128xf32, #tpu.memory_space<vmem>>) attributes {dimension_semantics = [#tpu.dimension_semantics<parallel>], iteration_bounds = array<i64: 1>, scalar_prefetch = 0 : i64, scratch_operands = 0 : i64, tpu.core_type = #tpu.core_type<tc>, window_params = [{transform_indices = @transform_0, window_bounds = array<i64: 128, 32>}, {pipeline_mode = #tpu.pipeline_mode<synchronous>, transform_indices = @transform_1, window_bounds = array<i64: 32, 128>}, {pipeline_mode = #tpu.pipeline_mode<synchronous>, transform_indices = @transform_2, window_bounds = array<i64: 1, 128>}, {pipeline_mode = #tpu.pipeline_mode<synchronous>, transform_indices = @transform_3, window_bounds = array<i64: 128, 128>}, {pipeline_mode = #tpu.pipeline_mode<synchronous>, transform_indices = @transform_4, window_bounds = array<i64: 1, 128>}, {pipeline_mode = #tpu.pipeline_mode<synchronous>, transform_indices = @transform_5, window_bounds = array<i64: 8, 128>}, {transform_indices = @transform_6, window_bounds = array<i64: 1>}, {transform_indices = @transform_7, window_bounds = array<i64: 1, 1, 128>}]} {
    %c0 = arith.constant 0 : index
    %c0_0 = arith.constant 0 : index
    %0 = vector.load %arg1[%c0, %c0_0] : memref<128x32xbf16, #tpu.memory_space<vmem>>, vector<128x32xbf16>
    %c0_1 = arith.constant 0 : index
    %c0_2 = arith.constant 0 : index
    %1 = vector.load %arg2[%c0_1, %c0_2] : memref<32x128xbf16, #tpu.memory_space<vmem>>, vector<32x128xbf16>
    %cst = arith.constant dense<0.000000e+00> : vector<128x128xf32>
    %2 = tpu.matmul %0, %1, %cst {dimension_numbers = #tpu.dot_dimension_numbers<[1], [0], [0], [1], [0, 0, 1, 1], [], []>} : vector<128x32xbf16>, vector<32x128xbf16>, vector<128x128xf32> -> vector<128x128xf32>
    %c0_3 = arith.constant 0 : index
    %c0_4 = arith.constant 0 : index
    %3 = vector.load %arg3[%c0_3, %c0_4] : memref<1x128xf32, #tpu.memory_space<vmem>>, vector<1x128xf32>
    %4 = vector.broadcast %3 : vector<1x128xf32> to vector<128x128xf32>
    %5 = arith.addf %2, %4 : vector<128x128xf32>
    %cst_5 = arith.constant 0.000000e+00 : f32
    %6 = vector.broadcast %cst_5 : f32 to vector<128x128xf32>
    %7 = arith.maximumf %5, %6 : vector<128x128xf32>
    %8 = arith.truncf %7 : vector<128x128xf32> to vector<128x128xbf16>
    %c0_6 = arith.constant 0 : index
    %c0_7 = arith.constant 0 : index
    %9 = vector.load %arg4[%c0_6, %c0_7] : memref<128x128xbf16, #tpu.memory_space<vmem>>, vector<128x128xbf16>
    %cst_8 = arith.constant dense<0.000000e+00> : vector<128x128xf32>
    %10 = tpu.matmul %8, %9, %cst_8 {dimension_numbers = #tpu.dot_dimension_numbers<[1], [0], [0], [1], [0, 0, 1, 1], [], []>} : vector<128x128xbf16>, vector<128x128xbf16>, vector<128x128xf32> -> vector<128x128xf32>
    %c0_9 = arith.constant 0 : index
    %c0_10 = arith.constant 0 : index
    %11 = vector.load %arg5[%c0_9, %c0_10] : memref<1x128xf32, #tpu.memory_space<vmem>>, vector<1x128xf32>
    %12 = vector.broadcast %11 : vector<1x128xf32> to vector<128x128xf32>
    %13 = arith.addf %10, %12 : vector<128x128xf32>
    %cst_11 = arith.constant 0.000000e+00 : f32
    %14 = vector.broadcast %cst_11 : f32 to vector<128x128xf32>
    %15 = arith.maximumf %13, %14 : vector<128x128xf32>
    %c0_12 = arith.constant 0 : index
    %c0_13 = arith.constant 0 : index
    %16 = vector.load %arg6[%c0_12, %c0_13] : memref<8x128xf32, #tpu.memory_space<vmem>>, vector<8x128xf32>
    %cst_14 = arith.constant dense<0.000000e+00> : vector<8x128xf32>
    %17 = tpu.matmul %16, %15, %cst_14 {dimension_numbers = #tpu.dot_dimension_numbers<[1], [1], [0], [0], [0, 0, 1, 0], [], []>} : vector<8x128xf32>, vector<128x128xf32>, vector<8x128xf32> -> vector<8x128xf32>
    %18 = vector.extract_strided_slice %17 {offsets = [0, 0], sizes = [1, 128], strides = [1, 1]} : vector<8x128xf32> to vector<1x128xf32>
    %c0_15 = arith.constant 0 : index
    %19 = memref.load %arg7[%c0_15] : memref<1xf32, #tpu.memory_space<smem>>
    %20 = vector.broadcast %19 : f32 to vector<1x128xf32>
    %21 = arith.addf %18, %20 : vector<1x128xf32>
    %22 = vector.shape_cast %21 : vector<1x128xf32> to vector<1x1x128xf32>
    %c0_16 = arith.constant 0 : index
    %c0_17 = arith.constant 0 : index
    %c0_18 = arith.constant 0 : index
    %23 = vector.load %arg8[%c0_16, %c0_17, %c0_18] : memref<1x1x128xf32, #tpu.memory_space<vmem>>, vector<1x1x128xf32>
    tpu.vector_store %arg8[%c0_16, %c0_17, %c0_18], %22 {strides = array<i32>} : memref<1x1x128xf32, #tpu.memory_space<vmem>>, vector<1x1x128xf32>,
    return
  }
  func.func @transform_0(%arg0: i32) -> (i32, i32) {
    %c0_i32 = arith.constant 0 : i32
    %c0_i32_0 = arith.constant 0 : i32
    return %arg0, %c0_i32 : i32, i32
  }
  func.func @transform_1(%arg0: i32) -> (i32, i32) {
    %c0_i32 = arith.constant 0 : i32
    %c0_i32_0 = arith.constant 0 : i32
    %c0_i32_1 = arith.constant 0 : i32
    return %c0_i32, %c0_i32_0 : i32, i32
  }
  func.func @transform_2(%arg0: i32) -> (i32, i32) {
    %c0_i32 = arith.constant 0 : i32
    %c0_i32_0 = arith.constant 0 : i32
    %c0_i32_1 = arith.constant 0 : i32
    return %c0_i32, %c0_i32_0 : i32, i32
  }
  func.func @transform_3(%arg0: i32) -> (i32, i32) {
    %c0_i32 = arith.constant 0 : i32
    %c0_i32_0 = arith.constant 0 : i32
    %c0_i32_1 = arith.constant 0 : i32
    return %c0_i32, %c0_i32_0 : i32, i32
  }
  func.func @transform_4(%arg0: i32) -> (i32, i32) {
    %c0_i32 = arith.constant 0 : i32
    %c0_i32_0 = arith.constant 0 : i32
    %c0_i32_1 = arith.constant 0 : i32
    return %c0_i32, %c0_i32_0 : i32, i32
  }
  func.func @transform_5(%arg0: i32) -> (i32, i32) {
    %c0_i32 = arith.constant 0 : i32
    %c0_i32_0 = arith.constant 0 : i32
    %c0_i32_1 = arith.constant 0 : i32
    return %c0_i32, %c0_i32_0 : i32, i32
  }
  func.func @transform_6(%arg0: i32) -> i32 {
    %c0_i32 = arith.constant 0 : i32
    %c0_i32_0 = arith.constant 0 : i32
    return %c0_i32 : i32
  }
  func.func @transform_7(%arg0: i32) -> (i32, i32, i32) {
    %c0_i32 = arith.constant 0 : i32
    %c0_i32_0 = arith.constant 0 : i32
    %c0_i32_1 = arith.constant 0 : i32
    return %arg0, %c0_i32, %c0_i32_0 : i32, i32, i32
  }
}

</mosaic_0001>

<llo_original>
// kernel: tpu_custom_call.1
$region0: #{tpu_custom_call.1}
  #allocation0 [shape = 'u32[]', space=smem, size = 0x4, offset = 0x4, fixed_abs, tag = 'smem constant byte address 0x4 - core index']
  #allocation1 [shape = 'u32[144,128]{1,0:T(1,128)}', space=vmem, size = 0x12000, scoped, tag = 'internal scratch']
  #allocation2 [shape = 'f32[1]{0:T(128)S(6)}', space=smem, size = 0x200, scoped, tag = 'scoped memory for tpu_custom_call.1']
  %s0 = inlined_call_operand.vmem [shape: bf16[128,32], index: 0, kind: input, shape index: {}]
  %s1 = inlined_call_operand.vmem [shape: bf16[32,128], index: 1, kind: input, shape index: {}]
  %s2 = inlined_call_operand.vmem [shape: f32[1,128], index: 2, kind: input, shape index: {}]
  %s3 = inlined_call_operand.vmem [shape: bf16[128,128], index: 3, kind: input, shape index: {}]
  %s4 = inlined_call_operand.vmem [shape: f32[1,128], index: 4, kind: input, shape index: {}]
  %s5 = inlined_call_operand.vmem [shape: f32[8,128], index: 5, kind: input, shape index: {}]
  %s6 = inlined_call_operand.<no memory space> [shape: f32[1], index: 6, kind: input, shape index: {}]
  %s7 = inlined_call_operand.hbm [shape: f32[1,1,128], index: 7, kind: output, shape index: {}]
  %s8 = sld [smem:[#allocation0]]
  $region38: #{tpu_custom_call.1} parent=0
    _
  %s10 = ssub.s32 1, %s8
  %s11 = scalar_select 0, %s10, %s8
  %12 = sst [smem:[#allocation2]] %s6
  $region1: #{tpu_custom_call.1} parent=0
    #allocation3 [shape = 'u8[512]{0}', space=vmem, size = 0x400, scoped, tag = 'output window, operand 0, single buffered']
    #allocation4 [shape = 's32[1]{0}', space=sflag, size = 0x4, scoped, tag = 'scoped memory for tpu_custom_call.1']
    %13 = vsyncpa [#allocation4], 0
    // Predicated region
    $region2: #{tpu_custom_call.1} parent=1 // pred_check
      _
    $region3: #{tpu_custom_call.1} parent=1 // pred_check_branch
      %15 = sbr.rel (0) target = $region5
    $region4: #{tpu_custom_call.1} parent=1 // pred_region
      _
    $region5: #{tpu_custom_call.1} parent=1 // pred_fallthru
      _
    // Predicated region
    $region6: #{tpu_custom_call.1} parent=1 // pred_check
      _
    $region7: #{tpu_custom_call.1} parent=1 // pred_check_branch
      %17 = sbr.rel (0) target = $region9
    $region8: #{tpu_custom_call.1} parent=1 // pred_region
      _
    $region9: #{tpu_custom_call.1} parent=1 // pred_fallthru
      _
    // Predicated region
    $region10: #{tpu_custom_call.1} parent=1 // pred_check
      _
    $region11: #{tpu_custom_call.1} parent=1 // pred_check_branch
      %19 = sbr.rel (0) target = $region13
    $region12: #{tpu_custom_call.1} parent=1 // pred_region
      _
    $region13: #{tpu_custom_call.1} parent=1 // pred_fallthru
      _
    // Predicated region
    $region14: #{tpu_custom_call.1} parent=1 // pred_check
      _
    $region15: #{tpu_custom_call.1} parent=1 // pred_check_branch
      %21 = sbr.rel (0) target = $region17
    $region16: #{tpu_custom_call.1} parent=1 // pred_region
      _
    $region17: #{tpu_custom_call.1} parent=1 // pred_fallthru
      _
    // Predicated region
    $region18: #{tpu_custom_call.1} parent=1 // pred_check
      _
    $region19: #{tpu_custom_call.1} parent=1 // pred_check_branch
      %23 = sbr.rel (0) target = $region21
    $region20: #{tpu_custom_call.1} parent=1 // pred_region
      _
    $region21: #{tpu_custom_call.1} parent=1 // pred_fallthru
      _
    // Predicated region
    $region22: #{tpu_custom_call.1} parent=1 // pred_check
      _
    $region23: #{tpu_custom_call.1} parent=1 // pred_check_branch
      %25 = sbr.rel (0) target = $region25
    $region24: #{tpu_custom_call.1} parent=1 // pred_region
      _
    $region25: #{tpu_custom_call.1} parent=1 // pred_fallthru
      _
    // Predicated region
    $region26: #{tpu_custom_call.1} parent=1 // pred_check
      _
    $region27: #{tpu_custom_call.1} parent=1 // pred_check_branch
      %27 = sbr.rel (0) target = $region29
    $region28: #{tpu_custom_call.1} parent=1 // pred_region
      _
    $region29: #{tpu_custom_call.1} parent=1 // pred_fallthru
      _
    %v29 = vld [vmem:[%s0] sm:$0xf]
    %v30 = vld [vmem:[%s0 + $0x4] sm:$0xf]
    %v31 = vld [vmem:[%s0 + $0x8] sm:$0xf]
    %v32 = vld [vmem:[%s0 + $0xc] sm:$0xf]
    %v33 = vld [vmem:[%s0 + $0x10] sm:$0xf]
    %v34 = vld [vmem:[%s0 + $0x14] sm:$0xf]
    %v35 = vld [vmem:[%s0 + $0x18] sm:$0xf]
    %v36 = vld [vmem:[%s0 + $0x1c] sm:$0xf]
    %v37 = vld [vmem:[%s0 + $0x20] sm:$0xf]
    %v38 = vld [vmem:[%s0 + $0x24] sm:$0xf]
    %v39 = vld [vmem:[%s0 + $0x28] sm:$0xf]
    %v40 = vld [vmem:[%s0 + $0x2c] sm:$0xf]
    %v41 = vld [vmem:[%s0 + $0x30] sm:$0xf]
    %v42 = vld [vmem:[%s0 + $0x34] sm:$0xf]
    %v43 = vld [vmem:[%s0 + $0x38] sm:$0xf]
    %v44 = vld [vmem:[%s0 + $0x3c] sm:$0xf]
    %v45 = vld [vmem:[%s1] sm:$0xf]
    %v46 = vld [vmem:[%s1 + $0x4] sm:$0xf]
    %v47 = vld [vmem:[%s1 + $0x8] sm:$0xf]
    %v48 = vld [vmem:[%s1 + $0xc] sm:$0xf]
    %v49 = vld [vmem:[%s2] sm:$0x1]
    %v51 = vlaneseq
    %v52 = vshrl.u32 %v51, 7
    %v53 = vsub.s32 0, %v52
    %v54 = vrot.slane %v49, %v53
    %v72 = vunpack.c.l.b16 %v29
    %v73 = vunpack.c.l.b16 %v30
    %v74 = vunpack.c.l.b16 %v31
    %v75 = vunpack.c.l.b16 %v32
    %v76 = vunpack.c.l.b16 %v33
    %v77 = vunpack.c.l.b16 %v34
    %v78 = vunpack.c.l.b16 %v35
    %v79 = vunpack.c.l.b16 %v36
    %v80 = vunpack.c.l.b16 %v37
    %v81 = vunpack.c.l.b16 %v38
    %v82 = vunpack.c.l.b16 %v39
    %v83 = vunpack.c.l.b16 %v40
    %v84 = vunpack.c.l.b16 %v41
    %v85 = vunpack.c.l.b16 %v42
    %v86 = vunpack.c.l.b16 %v43
    %v87 = vunpack.c.l.b16 %v44
    %v88 = vpack.c.b16 %v73, %v72
    %v89 = vpack.c.b16 %v75, %v74
    %v90 = vpack.c.b16 %v77, %v76
    %v91 = vpack.c.b16 %v79, %v78
    %v92 = vpack.c.b16 %v81, %v80
    %v93 = vpack.c.b16 %v83, %v82
    %v94 = vpack.c.b16 %v85, %v84
    %v95 = vpack.c.b16 %v87, %v86
    %v100 = vunpack.c.l.b16 %v45
    %v101 = vunpack.c.l.b16 %v46
    %v102 = vunpack.c.l.b16 %v47
    %v103 = vunpack.c.l.b16 %v48
    %v104 = vpack.c.b16 %v101, %v100
    %v105 = vpack.c.b16 %v103, %v102
    %vm108 = vcmask 261120
    %v110 = vsel %vm108, %v88, 0
    %v113 = vsel %vm108, %v89, 0
    %v116 = vsel %vm108, %v90, 0
    %v119 = vsel %vm108, %v91, 0
    %v122 = vsel %vm108, %v92, 0
    %v125 = vsel %vm108, %v93, 0
    %v128 = vsel %vm108, %v94, 0
    %v131 = vsel %vm108, %v95, 0
    %133 = vmatprep.subr.bf16.mxu0 0
    %134 = vmatpush1.bf16.msra.mxu0 %v104
    %135 = vmatprep.subr.bf16.mxu0 0
    %136 = vmatpush1.bf16.msra.mxu0 %v105
    %137 = vmatprep.subr.bf16.mxu0 0
    %138 = vmatpush1.bf16.msra.mxu0 0
    %139 = vmatprep.subr.bf16.mxu0 0
    %140 = vmatpush1.bf16.msra.mxu0 0
    %141 = vmatprep.subr.bf16.mxu0 0
    %142 = vmatpush1.bf16.msra.mxu0 0
    %143 = vmatprep.subr.bf16.mxu0 0
    %144 = vmatpush1.bf16.msra.mxu0 0
    %145 = vmatprep.subr.bf16.mxu0 0
    %146 = vmatpush1.bf16.msra.mxu0 0
    %147 = vmatprep.subr.bf16.mxu0 0
    %148 = vmatpush1.bf16.msra.mxu0 0
    %149 = vmatprep.subr.bf16.mxu0 0
    %150 = vmatpush1.bf16.msra.mxu0 0
    %151 = vmatprep.subr.bf16.mxu0 0
    %152 = vmatpush1.bf16.msra.mxu0 0
    %153 = vmatprep.subr.bf16.mxu0 0
    %154 = vmatpush1.bf16.msra.mxu0 0
    %155 = vmatprep.subr.bf16.mxu0 0
    %156 = vmatpush1.bf16.msra.mxu0 0
    %157 = vmatprep.subr.bf16.mxu0 0
    %158 = vmatpush1.bf16.msra.mxu0 0
    %159 = vmatprep.subr.bf16.mxu0 0
    %160 = vmatpush1.bf16.msra.mxu0 0
    %161 = vmatprep.subr.bf16.mxu0 0
    %162 = vmatpush1.bf16.msra.mxu0 0
    %163 = vmatprep.subr.bf16.mxu0 0
    %164 = vmatpush1.bf16.msra.mxu0 0
    %165 = vmatprep.mubr.bf16.mxu0 0
    %166 = vmatmul.mubr.bf16.gmra.mrb[0].mxu0 %v110
    %v167 = vpop.f32.mrb[0].mxu0
    %v168 = vadd.f32 %v54, %v167
    %v169 = vpop.f32.mrb[0].mxu0
    %v170 = vpop.f32.mrb[0].mxu0
    %v171 = vadd.f32 %v54, %v170
    %v172 = vpop.f32.mrb[0].mxu0
    %173 = vmatprep.mubr.bf16.mxu0 0
    %174 = vmatmul.mubr.bf16.gmra.mrb[0].mxu0 %v113
    %v175 = vpop.f32.mrb[0].mxu0
    %v176 = vadd.f32 %v54, %v175
    %v177 = vpop.f32.mrb[0].mxu0
    %v178 = vpop.f32.mrb[0].mxu0
    %v179 = vadd.f32 %v54, %v178
    %v180 = vpop.f32.mrb[0].mxu0
    %181 = vmatprep.mubr.bf16.mxu0 0
    %182 = vmatmul.mubr.bf16.gmra.mrb[0].mxu0 %v116
    %v183 = vpop.f32.mrb[0].mxu0
    %v184 = vadd.f32 %v54, %v183
    %v185 = vpop.f32.mrb[0].mxu0
    %v186 = vpop.f32.mrb[0].mxu0
    %v187 = vadd.f32 %v54, %v186
    %v188 = vpop.f32.mrb[0].mxu0
    %189 = vmatprep.mubr.bf16.mxu0 0
    %190 = vmatmul.mubr.bf16.gmra.mrb[0].mxu0 %v119
    %v191 = vpop.f32.mrb[0].mxu0
    %v192 = vadd.f32 %v54, %v191
    %v193 = vpop.f32.mrb[0].mxu0
    %v194 = vpop.f32.mrb[0].mxu0
    %v195 = vadd.f32 %v54, %v194
    %v196 = vpop.f32.mrb[0].mxu0
    %197 = vmatprep.mubr.bf16.mxu0 0
    %198 = vmatmul.mubr.bf16.gmra.mrb[0].mxu0 %v122
    %v199 = vpop.f32.mrb[0].mxu0
    %v200 = vadd.f32 %v54, %v199
    %v201 = vpop.f32.mrb[0].mxu0
    %v202 = vpop.f32.mrb[0].mxu0
    %v203 = vadd.f32 %v54, %v202
    %v204 = vpop.f32.mrb[0].mxu0
    %205 = vmatprep.mubr.bf16.mxu0 0
    %206 = vmatmul.mubr.bf16.gmra.mrb[0].mxu0 %v125
    %v207 = vpop.f32.mrb[0].mxu0
    %v208 = vadd.f32 %v54, %v207
    %v209 = vpop.f32.mrb[0].mxu0
    %v210 = vpop.f32.mrb[0].mxu0
    %v211 = vadd.f32 %v54, %v210
    %v212 = vpop.f32.mrb[0].mxu0
    %213 = vmatprep.mubr.bf16.mxu0 0
    %214 = vmatmul.mubr.bf16.gmra.mrb[0].mxu0 %v128
    %v215 = vpop.f32.mrb[0].mxu0
    %v216 = vadd.f32 %v54, %v215
    %v217 = vpop.f32.mrb[0].mxu0
    %v218 = vpop.f32.mrb[0].mxu0
    %v219 = vadd.f32 %v54, %v218
    %v220 = vpop.f32.mrb[0].mxu0
    %221 = vmatprep.mubr.bf16.mxu0 0
    %222 = vmatmul.mubr.bf16.gmra.mrb[0].mxu0 %v131
    %v223 = vpop.f32.mrb[0].mxu0
    %v224 = vadd.f32 %v54, %v223
    %v225 = vpop.f32.mrb[0].mxu0
    %v226 = vpop.f32.mrb[0].mxu0
    %v227 = vadd.f32 %v54, %v226
    %v228 = vpop.f32.mrb[0].mxu0
    %229 = vdwg.mxu0
    %v230 = vmax.f32 %v168, 0.0
    %v231 = vmax.f32 %v171, 0.0
    %v232 = vmax.f32 %v176, 0.0
    %v233 = vmax.f32 %v179, 0.0
    %v234 = vmax.f32 %v184, 0.0
    %v235 = vmax.f32 %v187, 0.0
    %v236 = vmax.f32 %v192, 0.0
    %v237 = vmax.f32 %v195, 0.0
    %v238 = vmax.f32 %v200, 0.0
    %v239 = vmax.f32 %v203, 0.0
    %v240 = vmax.f32 %v208, 0.0
    %v241 = vmax.f32 %v211, 0.0
    %v242 = vmax.f32 %v216, 0.0
    %v243 = vmax.f32 %v219, 0.0
    %v244 = vmax.f32 %v224, 0.0
    %v245 = vmax.f32 %v227, 0.0
    %v246 = vpack.c.bf16 %v231, %v230
    %v247 = vpack.c.bf16 %v233, %v232
    %v248 = vpack.c.bf16 %v235, %v234
    %v249 = vpack.c.bf16 %v237, %v236
    %v250 = vpack.c.bf16 %v239, %v238
    %v251 = vpack.c.bf16 %v241, %v240
    %v252 = vpack.c.bf16 %v243, %v242
    %v253 = vpack.c.bf16 %v245, %v244
    %v254 = vld [vmem:[%s3] sm:$0xf]
    %v255 = vld [vmem:[%s3 + $0x4] sm:$0xf]
    %v256 = vld [vmem:[%s3 + $0x8] sm:$0xf]
    %v257 = vld [vmem:[%s3 + $0xc] sm:$0xf]
    %v258 = vld [vmem:[%s3 + $0x10] sm:$0xf]
    %v259 = vld [vmem:[%s3 + $0x14] sm:$0xf]
    %v260 = vld [vmem:[%s3 + $0x18] sm:$0xf]
    %v261 = vld [vmem:[%s3 + $0x1c] sm:$0xf]
    %v262 = vld [vmem:[%s3 + $0x20] sm:$0xf]
    %v263 = vld [vmem:[%s3 + $0x24] sm:$0xf]
    %v264 = vld [vmem:[%s3 + $0x28] sm:$0xf]
    %v265 = vld [vmem:[%s3 + $0x2c] sm:$0xf]
    %v266 = vld [vmem:[%s3 + $0x30] sm:$0xf]
    %v267 = vld [vmem:[%s3 + $0x34] sm:$0xf]
    %v268 = vld [vmem:[%s3 + $0x38] sm:$0xf]
    %v269 = vld [vmem:[%s3 + $0x3c] sm:$0xf]
    %v270 = vld [vmem:[%s4] sm:$0x1]
    %v272 = vlaneseq
    %v273 = vshrl.u32 %v272, 7
    %v274 = vsub.s32 0, %v273
    %v275 = vrot.slane %v270, %v274
    %v293 = vunpack.c.l.b16 %v254
    %v294 = vunpack.c.l.b16 %v255
    %v295 = vunpack.c.l.b16 %v256
    %v296 = vunpack.c.l.b16 %v257
    %v297 = vunpack.c.l.b16 %v258
    %v298 = vunpack.c.l.b16 %v259
    %v299 = vunpack.c.l.b16 %v260
    %v300 = vunpack.c.l.b16 %v261
    %v301 = vunpack.c.l.b16 %v262
    %v302 = vunpack.c.l.b16 %v263
    %v303 = vunpack.c.l.b16 %v264
    %v304 = vunpack.c.l.b16 %v265
    %v305 = vunpack.c.l.b16 %v266
    %v306 = vunpack.c.l.b16 %v267
    %v307 = vunpack.c.l.b16 %v268
    %v308 = vunpack.c.l.b16 %v269
    %v309 = vpack.c.b16 %v294, %v293
    %v310 = vpack.c.b16 %v296, %v295
    %v311 = vpack.c.b16 %v298, %v297
    %v312 = vpack.c.b16 %v300, %v299
    %v313 = vpack.c.b16 %v302, %v301
    %v314 = vpack.c.b16 %v304, %v303
    %v315 = vpack.c.b16 %v306, %v305
    %v316 = vpack.c.b16 %v308, %v307
    %325 = vmatprep.subr.bf16.mxu0 0
    %326 = vmatpush1.bf16.msra.mxu0 %v309
    %327 = vmatprep.subr.bf16.mxu0 0
    %328 = vmatpush1.bf16.msra.mxu0 %v310
    %329 = vmatprep.subr.bf16.mxu0 0
    %330 = vmatpush1.bf16.msra.mxu0 %v311
    %331 = vmatprep.subr.bf16.mxu0 0
    %332 = vmatpush1.bf16.msra.mxu0 %v312
    %333 = vmatprep.subr.bf16.mxu0 0
    %334 = vmatpush1.bf16.msra.mxu0 %v313
    %335 = vmatprep.subr.bf16.mxu0 0
    %336 = vmatpush1.bf16.msra.mxu0 %v314
    %337 = vmatprep.subr.bf16.mxu0 0
    %338 = vmatpush1.bf16.msra.mxu0 %v315
    %339 = vmatprep.subr.bf16.mxu0 0
    %340 = vmatpush1.bf16.msra.mxu0 %v316
    %341 = vmatprep.subr.bf16.mxu0 0
    %342 = vmatpush1.bf16.msra.mxu0 0
    %343 = vmatprep.subr.bf16.mxu0 0
    %344 = vmatpush1.bf16.msra.mxu0 0
    %345 = vmatprep.subr.bf16.mxu0 0
    %346 = vmatpush1.bf16.msra.mxu0 0
    %347 = vmatprep.subr.bf16.mxu0 0
    %348 = vmatpush1.bf16.msra.mxu0 0
    %349 = vmatprep.subr.bf16.mxu0 0
    %350 = vmatpush1.bf16.msra.mxu0 0
    %351 = vmatprep.subr.bf16.mxu0 0
    %352 = vmatpush1.bf16.msra.mxu0 0
    %353 = vmatprep.subr.bf16.mxu0 0
    %354 = vmatpush1.bf16.msra.mxu0 0
    %355 = vmatprep.subr.bf16.mxu0 0
    %356 = vmatpush1.bf16.msra.mxu0 0
    %357 = vmatprep.mubr.bf16.mxu0 0
    %358 = vmatmul.mubr.bf16.gmra.mrb[0].mxu0 %v246
    %v359 = vpop.f32.mrb[0].mxu0
    %v360 = vadd.f32 %v275, %v359
    %v361 = vpop.f32.mrb[0].mxu0
    %v362 = vpop.f32.mrb[0].mxu0
    %v363 = vadd.f32 %v275, %v362
    %v364 = vpop.f32.mrb[0].mxu0
    %365 = vmatprep.mubr.bf16.mxu0 0
    %366 = vmatmul.mubr.bf16.gmra.mrb[0].mxu0 %v247
    %v367 = vpop.f32.mrb[0].mxu0
    %v368 = vadd.f32 %v275, %v367
    %v369 = vpop.f32.mrb[0].mxu0
    %v370 = vpop.f32.mrb[0].mxu0
    %v371 = vadd.f32 %v275, %v370
    %v372 = vpop.f32.mrb[0].mxu0
    %373 = vmatprep.mubr.bf16.mxu0 0
    %374 = vmatmul.mubr.bf16.gmra.mrb[0].mxu0 %v248
    %v375 = vpop.f32.mrb[0].mxu0
    %v376 = vadd.f32 %v275, %v375
    %v377 = vpop.f32.mrb[0].mxu0
    %v378 = vpop.f32.mrb[0].mxu0
    %v379 = vadd.f32 %v275, %v378
    %v380 = vpop.f32.mrb[0].mxu0
    %381 = vmatprep.mubr.bf16.mxu0 0
    %382 = vmatmul.mubr.bf16.gmra.mrb[0].mxu0 %v249
    %v383 = vpop.f32.mrb[0].mxu0
    %v384 = vadd.f32 %v275, %v383
    %v385 = vpop.f32.mrb[0].mxu0
    %v386 = vpop.f32.mrb[0].mxu0
    %v387 = vadd.f32 %v275, %v386
    %v388 = vpop.f32.mrb[0].mxu0
    %389 = vmatprep.mubr.bf16.mxu0 0
    %390 = vmatmul.mubr.bf16.gmra.mrb[0].mxu0 %v250
    %v391 = vpop.f32.mrb[0].mxu0
    %v392 = vadd.f32 %v275, %v391
    %v393 = vpop.f32.mrb[0].mxu0
    %v394 = vpop.f32.mrb[0].mxu0
    %v395 = vadd.f32 %v275, %v394
    %v396 = vpop.f32.mrb[0].mxu0
    %397 = vmatprep.mubr.bf16.mxu0 0
    %398 = vmatmul.mubr.bf16.gmra.mrb[0].mxu0 %v251
    %v399 = vpop.f32.mrb[0].mxu0
    %v400 = vadd.f32 %v275, %v399
    %v401 = vpop.f32.mrb[0].mxu0
    %v402 = vpop.f32.mrb[0].mxu0
    %v403 = vadd.f32 %v275, %v402
    %v404 = vpop.f32.mrb[0].mxu0
    %405 = vmatprep.mubr.bf16.mxu0 0
    %406 = vmatmul.mubr.bf16.gmra.mrb[0].mxu0 %v252
    %v407 = vpop.f32.mrb[0].mxu0
    %v408 = vadd.f32 %v275, %v407
    %v409 = vpop.f32.mrb[0].mxu0
    %v410 = vpop.f32.mrb[0].mxu0
    %v411 = vadd.f32 %v275, %v410
    %v412 = vpop.f32.mrb[0].mxu0
    %413 = vmatprep.mubr.bf16.mxu0 0
    %414 = vmatmul.mubr.bf16.gmra.mrb[0].mxu0 %v253
    %v415 = vpop.f32.mrb[0].mxu0
    %v416 = vadd.f32 %v275, %v415
    %v417 = vpop.f32.mrb[0].mxu0
    %v418 = vpop.f32.mrb[0].mxu0
    %v419 = vadd.f32 %v275, %v418
    %v420 = vpop.f32.mrb[0].mxu0
    %421 = vdwg.mxu0
    %v422 = vmax.f32 %v360, 0.0
    %v423 = vmax.f32 %v363, 0.0
    %v424 = vmax.f32 %v368, 0.0
    %v425 = vmax.f32 %v371, 0.0
    %v426 = vmax.f32 %v376, 0.0
    %v427 = vmax.f32 %v379, 0.0
    %v428 = vmax.f32 %v384, 0.0
    %v429 = vmax.f32 %v387, 0.0
    %v430 = vmax.f32 %v392, 0.0
    %v431 = vmax.f32 %v395, 0.0
    %v432 = vmax.f32 %v400, 0.0
    %v433 = vmax.f32 %v403, 0.0
    %v434 = vmax.f32 %v408, 0.0
    %v435 = vmax.f32 %v411, 0.0
    %v436 = vmax.f32 %v416, 0.0
    %v437 = vmax.f32 %v419, 0.0
    %v438 = vld [vmem:[%s5] sm:$0xff]
    %439 = vmatprep.subr.mxu0 0.0
    %440 = vmatpush1.xpose.msra.mxu0 %v422
    %441 = vmatprep.subr.mxu0 0.0
    %442 = vmatpush1.xpose.msra.mxu0 %v423
    %443 = vmatprep.subr.mxu0 0.0
    %444 = vmatpush1.xpose.msra.mxu0 %v424
    %445 = vmatprep.subr.mxu0 0.0
    %446 = vmatpush1.xpose.msra.mxu0 %v425
    %447 = vmatprep.subr.mxu0 0.0
    %448 = vmatpush1.xpose.msra.mxu0 %v426
    %449 = vmatprep.subr.mxu0 0.0
    %450 = vmatpush1.xpose.msra.mxu0 %v427
    %451 = vmatprep.subr.mxu0 0.0
    %452 = vmatpush1.xpose.msra.mxu0 %v428
    %453 = vmatprep.subr.mxu0 0.0
    %454 = vmatpush1.xpose.msra.mxu0 %v429
    %455 = vmatprep.subr.mxu0 0.0
    %456 = vmatpush1.xpose.msra.mxu0 %v430
    %457 = vmatprep.subr.mxu0 0.0
    %458 = vmatpush1.xpose.msra.mxu0 %v431
    %459 = vmatprep.subr.mxu0 0.0
    %460 = vmatpush1.xpose.msra.mxu0 %v432
    %461 = vmatprep.subr.mxu0 0.0
    %462 = vmatpush1.xpose.msra.mxu0 %v433
    %463 = vmatprep.subr.mxu0 0.0
    %464 = vmatpush1.xpose.msra.mxu0 %v434
    %465 = vmatprep.subr.mxu0 0.0
    %466 = vmatpush1.xpose.msra.mxu0 %v435
    %467 = vmatprep.subr.mxu0 0.0
    %468 = vmatpush1.xpose.msra.mxu0 %v436
    %469 = vmatprep.subr.mxu0 0.0
    %470 = vmatpush1.xpose.msra.mxu0 %v437
    %471 = vmatprep.subr.mxu0 0.0
    %472 = vmatpush1.xpose.msra.mxu0 0.0
    %473 = vmatprep.subr.mxu0 0.0
    %474 = vmatpush1.xpose.msra.mxu0 0.0
    %475 = vmatprep.subr.mxu0 0.0
    %476 = vmatpush1.xpose.msra.mxu0 0.0
    %477 = vmatprep.subr.mxu0 0.0
    %478 = vmatpush1.xpose.msra.mxu0 0.0
    %479 = vmatprep.subr.mxu0 0.0
    %480 = vmatpush1.xpose.msra.mxu0 0.0
    %481 = vmatprep.subr.mxu0 0.0
    %482 = vmatpush1.xpose.msra.mxu0 0.0
    %483 = vmatprep.subr.mxu0 0.0
    %484 = vmatpush1.xpose.msra.mxu0 0.0
    %485 = vmatprep.subr.mxu0 0.0
    %486 = vmatpush1.xpose.msra.mxu0 0.0
    %487 = vmatprep.subr.mxu0 0.0
    %488 = vmatpush1.xpose.msra.mxu0 0.0
    %489 = vmatprep.subr.mxu0 0.0
    %490 = vmatpush1.xpose.msra.mxu0 0.0
    %491 = vmatprep.subr.mxu0 0.0
    %492 = vmatpush1.xpose.msra.mxu0 0.0
    %493 = vmatprep.subr.mxu0 0.0
    %494 = vmatpush1.xpose.msra.mxu0 0.0
    %495 = vmatprep.subr.mxu0 0.0
    %496 = vmatpush1.xpose.msra.mxu0 0.0
    %497 = vmatprep.subr.mxu0 0.0
    %498 = vmatpush1.xpose.msra.mxu0 0.0
    %499 = vmatprep.subr.mxu0 0.0
    %500 = vmatpush1.xpose.msra.mxu0 0.0
    %501 = vmatprep.subr.mxu0 0.0
    %502 = vmatpush1.xpose.msra.mxu0 0.0
    %503 = vmatprep.mubr.f32.mxu0 0.0
    %504 = vmatmul.mubr.f32.gmra.mrb[0].mxu0 %v438
    %v505 = vpop.f32.mrb[0].mxu0
    %v506 = vadd.f32 0.0, %v505
    %v507 = vpop.f32.mrb[0].mxu0
    %508 = vdwg.mxu0
    %s509 = sld [smem:[#allocation2]]
    %v510 = vstv %s509
    %v511 = vadd.f32 %v506, %v510
    %512 = vst [vmem:[#allocation3] sm:$0x1] %v511
    // Predicated region
    $region30: #{tpu_custom_call.1} parent=1 // pred_check
      _
    $region31: #{tpu_custom_call.1} parent=1 // pred_check_branch
      %514 = sbr.rel (0) target = $region33
    $region32: #{tpu_custom_call.1} parent=1 // pred_region
      %s516 = ssub.s32 16, 16
      %517 = vsyncadd [#allocation4], %s516
      %s519 = sshll.u32 [#allocation3], 4
      %s520 = int_to_ptr.vmem [resolvable:$true] %s519
      %522 = dma.vmem_to_hbm [thread:$0]  %s520, 16, %s7, [#allocation4]
    $region33: #{tpu_custom_call.1} parent=1 // pred_fallthru
      _
    // Predicated region
    $region34: #{tpu_custom_call.1} parent=1 // pred_check
      _
    $region35: #{tpu_custom_call.1} parent=1 // pred_check_branch
      %524 = sbr.rel (0) target = $region37
    $region36: #{tpu_custom_call.1} parent=1 // pred_region
      %525 = dma.done [#allocation4], 16
    $region37: #{tpu_custom_call.1} parent=1 // pred_fallthru
      _
    %526 = vsyncpa [#allocation4], 1

</llo_original>
